<compile_context>
chip_gen: v7x
topology: tpu7x:2x2x1
jax: 0.10.0
libtpu: 0.0.40
codegen_flags: <defaults>
</compile_context>

<pallas_src>
import numpy as np
import jax
import jax.numpy as jnp
from jax.experimental import pallas as pl
from jax.experimental.pallas import tpu as pltpu


def _fast_recip(x):
    """1/x on the EUP (approx) + one Newton refinement (rel. err ~1e-7)."""
    r = pl.reciprocal(x, approx=True)
    return r * (2.0 - x * r)


def _make_aploss_kernel(nq, a, vmin):
    a = float(a)
    vmin = float(vmin)
    kvals = [float(nq - 1 - c) for c in range(nq)]

    def kernel(x_ref, l_ref, ap_ref, rec_acc, nbs_acc):
        j = pl.program_id(1)

        # --- init accumulators at the first M step of each N tile -----------
        @pl.when(j == 0)
        def _():
            rec_acc[...] = jnp.zeros_like(rec_acc)
            nbs_acc[...] = jnp.zeros_like(nbs_acc)

        x = x_ref[...].astype(jnp.float32)       # (bn, bm)
        lbl = l_ref[...].astype(jnp.float32)     # (bn, bm)
        t = x * a if vmin == 0.0 else (x - vmin) * a

        # --- unrolled per-bin loop: never materialize a (bn, nq, bm) tensor --
        rec_cols = []
        nbs_cols = []
        for c in range(nq):
            k = kvals[c]
            if c == 0:
                # channel 0 of the first half is pinned to constant 1:
                # q = relu(min(1, 1 + (t - k)))
                q = jnp.maximum(jnp.minimum(1.0 + (t - k), 1.0), 0.0)
            elif c == nq - 1:
                # last channel of the second half is pinned to constant 1 (k=0):
                # q = relu(min(1, 1 - t))
                q = jnp.maximum(jnp.minimum(1.0 - t, 1.0), 0.0)
            else:
                q = jnp.maximum(1.0 - jnp.abs(t - k), 0.0)
            nbs_cols.append(jnp.sum(q, axis=-1, keepdims=True))          # (bn, 1)
            rec_cols.append(jnp.sum(q * lbl, axis=-1, keepdims=True))    # (bn, 1)

        # single accumulate+store per M tile (keeps the store slot off the hot loop)
        rec_acc[...] += jnp.concatenate(rec_cols, axis=-1)               # (bn, nq)
        nbs_acc[...] += jnp.concatenate(nbs_cols, axis=-1)               # (bn, nq)

        # --- finalize at the last M step: cumsum / precision / AP ----------
        @pl.when(j == pl.num_programs(1) - 1)
        def _():
            rec = rec_acc[...]                    # (bn, nq)
            nbs = nbs_acc[...]                    # (bn, nq)

            # cumsum over bins via one tiny MXU matmul with a triangular matrix:
            # cum[n, i] = sum_{c <= i} v[n, c]
            cc = jax.lax.broadcasted_iota(jnp.int32, (nq, nq), 0)
            ii = jax.lax.broadcasted_iota(jnp.int32, (nq, nq), 1)
            tri = (cc <= ii).astype(jnp.float32)  # (nq, nq)
            cum_rec = jnp.dot(rec, tri, preferred_element_type=jnp.float32)
            cum_nbs = jnp.dot(nbs, tri, preferred_element_type=jnp.float32)

            prec = cum_rec * _fast_recip(1e-16 + cum_nbs)                # (bn, nq)
            rec_tot = cum_rec[:, nq - 1:nq]       # == rec.sum(-1, keepdims=True)
            # NOTE: rows with no positives give rec_tot == 0 -> NaN, exactly like
            # the PyTorch reference (no guard added to preserve semantics).
            ap = jnp.sum(prec * rec * _fast_recip(rec_tot), axis=-1, keepdims=True)
            ap_ref[...] = ap                      # (bn, 1)

    return kernel


def _pick_tile(dim, target, quantum):
    """Largest tile <= target that is a multiple of `quantum` and divides `dim`;
    falls back to the full dim (always a legal block size)."""
    if dim <= target:
        return dim
    t = (target // quantum) * quantum
    while t >= quantum:
        if dim % t == 0:
            return t
        t -= quantum
    return dim


def ap_loss(x, label, nq=25, vmin=0.0, vmax=1.0, block_n=256, block_m=1024):
    """Returns 1 - mAP (scalar), matching APLoss.forward(x, label, ret='1-mAP')."""
    assert x.shape == label.shape and x.ndim == 2
    assert isinstance(nq, int) and 2 <= nq <= 100
    gap = float(vmax) - float(vmin)
    assert gap > 0
    a = (nq - 1) / gap

    N, M = x.shape
    bn = _pick_tile(N, block_n, 8)
    bm = _pick_tile(M, block_m, 128)
    grid = (N // bn, M // bm)

    kernel = _make_aploss_kernel(nq, a, vmin)

    ap = pl.pallas_call(
        kernel,
        out_shape=jax.ShapeDtypeStruct((N, 1), jnp.float32),
        grid_spec=pltpu.PrefetchScalarGridSpec(
            num_scalar_prefetch=0,
            grid=grid,
            in_specs=[
                pl.BlockSpec((bn, bm), lambda i, j: (i, j)),   # x tile
                pl.BlockSpec((bn, bm), lambda i, j: (i, j)),   # label tile
            ],
            out_specs=pl.BlockSpec((bn, 1), lambda i, j: (i, 0)),  # per-row AP
            scratch_shapes=[
                pltpu.VMEM((bn, nq), jnp.float32),   # rec accumulator
                pltpu.VMEM((bn, nq), jnp.float32),   # nbs accumulator
            ],
        ),
        compiler_params=pltpu.CompilerParams(
            dimension_semantics=("parallel", "arbitrary"),
            vmem_limit_bytes=48 * 1024 * 1024,   # safe on v5e/v6e (128 MiB) and v7x (64 MiB)
        ),
    )(x, label)   # bf16 inputs are accepted; the kernel widens per tile

    return 1.0 - jnp.mean(ap)


# ----------------------------------------------------------------------------
# Pure-JAX reference mirroring the PyTorch forward (independent code path:
# uses the explicit Conv1d weights rather than the algebraic rewrite).
# ----------------------------------------------------------------------------
def make_quantizer_params(nq=25, vmin=0.0, vmax=1.0):
    gap = float(vmax - vmin)
    assert gap > 0 and isinstance(nq, int) and 2 <= nq <= 100
    a = (nq - 1) / gap
    w = np.zeros(2 * nq, np.float32)
    b = np.zeros(2 * nq, np.float32)
    w[:nq] = -a
    b[:nq] = a * vmin + np.arange(nq, 0, -1)
    w[nq:] = a
    b[nq:] = np.arange(2 - nq, 2, 1) - a * vmin
    w[0] = w[-1] = 0.0
    b[0] = b[-1] = 1.0
    w1 = jnp.asarray(w[:nq]).reshape(nq, 1)
    b1 = jnp.asarray(b[:nq]).reshape(nq, 1)
    w2 = jnp.asarray(w[nq:]).reshape(nq, 1)
    b2 = jnp.asarray(b[nq:]).reshape(nq, 1)
    return w1, b1, w2, b2


def _ap_loss_reference(x, label, nq=25, vmin=0.0, vmax=1.0):
    w1, b1, w2, b2 = make_quantizer_params(nq, vmin, vmax)
    x = x.astype(jnp.float32)
    label = label.astype(jnp.float32)
    q1 = w1[None, :, :] * x[:, None, :] + b1[None, :, :]
    q2 = w2[None, :, :] * x[:, None, :] + b2[None, :, :]
    q = jnp.clip(jnp.minimum(q1, q2), 0.0, None)
    nbs = q.sum(-1)
    rec = (q * label[:, None, :]).sum(-1)
    prec = jnp.cumsum(rec, -1) / (1e-16 + jnp.cumsum(nbs, -1))
    rec = rec / rec.sum(-1, keepdims=True)
    ap = (prec * rec).sum(-1)
    return 1.0 - ap.mean()


if __name__ == "__main__":
    N, M, NQ = 16, 256, 25
    key = jax.random.PRNGKey(0)
    kx, kl = jax.random.split(key)
    # scores in [0, 1] and binary relevance labels
    x = jax.random.uniform(kx, (N, M), dtype=jnp.float32)
    label = (jax.random.uniform(kl, (N, M), dtype=jnp.float32) < 0.3).astype(jnp.float32)

    # Small blocks so the demo exercises the 2x2 grid + M-axis accumulation path.
    loss = ap_loss(x, label, nq=NQ, vmin=0.0, vmax=1.0, block_n=8, block_m=128)
    loss = jax.block_until_ready(loss)

    ref = jax.block_until_ready(_ap_loss_reference(x, label, nq=NQ))
    np.testing.assert_allclose(np.asarray(loss), np.asarray(ref), rtol=1e-4, atol=1e-5)

    print("KERNEL_OK")
</pallas_src>

<mosaic_0001>
module attributes {stable_mosaic.version = 11 : i64} {
  func.func @kernel(%arg0: i32, %arg1: i32, %arg2: memref<8x128xf32, #tpu.memory_space<vmem>>, %arg3: memref<8x128xf32, #tpu.memory_space<vmem>>, %arg4: memref<8x1xf32, #tpu.memory_space<vmem>>, %arg5: memref<8x25xf32, #tpu.memory_space<vmem>>, %arg6: memref<8x25xf32, #tpu.memory_space<vmem>>) attributes {dimension_semantics = [#tpu.dimension_semantics<parallel>, #tpu.dimension_semantics<arbitrary>], iteration_bounds = array<i64: 2, 2>, scalar_prefetch = 0 : i64, scratch_operands = 2 : i64, tpu.core_type = #tpu.core_type<tc>, window_params = [{transform_indices = @transform_0, window_bounds = array<i64: 8, 128>}, {transform_indices = @transform_1, window_bounds = array<i64: 8, 128>}, {transform_indices = @transform_2, window_bounds = array<i64: 8, 1>}]} {
    %c0_i32 = arith.constant 0 : i32
    %0 = arith.cmpi eq, %arg1, %c0_i32 : i32
    %1 = arith.extui %0 : i1 to i32
    %c0_i32_0 = arith.constant 0 : i32
    %2 = arith.cmpi ne, %1, %c0_i32_0 : i32
    scf.if %2 {
      %cst_139 = arith.constant 0.000000e+00 : f32
      %322 = vector.broadcast %cst_139 : f32 to vector<8x25xf32>
      %c0_140 = arith.constant 0 : index
      %c0_141 = arith.constant 0 : index
      %323 = vector.load %arg5[%c0_140, %c0_141] : memref<8x25xf32, #tpu.memory_space<vmem>>, vector<8x25xf32>
      tpu.vector_store %arg5[%c0_140, %c0_141], %322 {strides = array<i32>} : memref<8x25xf32, #tpu.memory_space<vmem>>, vector<8x25xf32>,
      %cst_142 = arith.constant 0.000000e+00 : f32
      %324 = vector.broadcast %cst_142 : f32 to vector<8x25xf32>
      %c0_143 = arith.constant 0 : index
      %c0_144 = arith.constant 0 : index
      %325 = vector.load %arg6[%c0_143, %c0_144] : memref<8x25xf32, #tpu.memory_space<vmem>>, vector<8x25xf32>
      tpu.vector_store %arg6[%c0_143, %c0_144], %324 {strides = array<i32>} : memref<8x25xf32, #tpu.memory_space<vmem>>, vector<8x25xf32>,
    } else {
    }
    %c0 = arith.constant 0 : index
    %c0_1 = arith.constant 0 : index
    %3 = vector.load %arg2[%c0, %c0_1] : memref<8x128xf32, #tpu.memory_space<vmem>>, vector<8x128xf32>
    %c0_2 = arith.constant 0 : index
    %c0_3 = arith.constant 0 : index
    %4 = vector.load %arg3[%c0_2, %c0_3] : memref<8x128xf32, #tpu.memory_space<vmem>>, vector<8x128xf32>
    %cst = arith.constant 2.400000e+01 : f32
    %5 = vector.broadcast %cst : f32 to vector<8x128xf32>
    %6 = arith.mulf %3, %5 : vector<8x128xf32>
    %cst_4 = arith.constant 2.400000e+01 : f32
    %7 = vector.broadcast %cst_4 : f32 to vector<8x128xf32>
    %8 = arith.subf %6, %7 : vector<8x128xf32>
    %cst_5 = arith.constant 1.000000e+00 : f32
    %9 = vector.broadcast %cst_5 : f32 to vector<8x128xf32>
    %10 = arith.addf %9, %8 : vector<8x128xf32>
    %cst_6 = arith.constant 1.000000e+00 : f32
    %11 = vector.broadcast %cst_6 : f32 to vector<8x128xf32>
    %12 = arith.minimumf %10, %11 : vector<8x128xf32>
    %cst_7 = arith.constant 0.000000e+00 : f32
    %13 = vector.broadcast %cst_7 : f32 to vector<8x128xf32>
    %14 = arith.maximumf %12, %13 : vector<8x128xf32>
    %cst_8 = arith.constant dense<0.000000e+00> : vector<8xf32>
    %15 = vector.multi_reduction <add>, %14, %cst_8 [1] : vector<8x128xf32> to vector<8xf32>
    %16 = vector.shape_cast %15 : vector<8xf32> to vector<8x1xf32>
    %17 = arith.mulf %14, %4 : vector<8x128xf32>
    %cst_9 = arith.constant dense<0.000000e+00> : vector<8xf32>
    %18 = vector.multi_reduction <add>, %17, %cst_9 [1] : vector<8x128xf32> to vector<8xf32>
    %19 = vector.shape_cast %18 : vector<8xf32> to vector<8x1xf32>
    %cst_10 = arith.constant 2.300000e+01 : f32
    %20 = vector.broadcast %cst_10 : f32 to vector<8x128xf32>
    %21 = arith.subf %6, %20 : vector<8x128xf32>
    %22 = math.absf %21 : vector<8x128xf32>
    %cst_11 = arith.constant 1.000000e+00 : f32
    %23 = vector.broadcast %cst_11 : f32 to vector<8x128xf32>
    %24 = arith.subf %23, %22 : vector<8x128xf32>
    %cst_12 = arith.constant 0.000000e+00 : f32
    %25 = vector.broadcast %cst_12 : f32 to vector<8x128xf32>
    %26 = arith.maximumf %24, %25 : vector<8x128xf32>
    %cst_13 = arith.constant dense<0.000000e+00> : vector<8xf32>
    %27 = vector.multi_reduction <add>, %26, %cst_13 [1] : vector<8x128xf32> to vector<8xf32>
    %28 = vector.shape_cast %27 : vector<8xf32> to vector<8x1xf32>
    %29 = arith.mulf %26, %4 : vector<8x128xf32>
    %cst_14 = arith.constant dense<0.000000e+00> : vector<8xf32>
    %30 = vector.multi_reduction <add>, %29, %cst_14 [1] : vector<8x128xf32> to vector<8xf32>
    %31 = vector.shape_cast %30 : vector<8xf32> to vector<8x1xf32>
    %cst_15 = arith.constant 2.200000e+01 : f32
    %32 = vector.broadcast %cst_15 : f32 to vector<8x128xf32>
    %33 = arith.subf %6, %32 : vector<8x128xf32>
    %34 = math.absf %33 : vector<8x128xf32>
    %cst_16 = arith.constant 1.000000e+00 : f32
    %35 = vector.broadcast %cst_16 : f32 to vector<8x128xf32>
    %36 = arith.subf %35, %34 : vector<8x128xf32>
    %cst_17 = arith.constant 0.000000e+00 : f32
    %37 = vector.broadcast %cst_17 : f32 to vector<8x128xf32>
    %38 = arith.maximumf %36, %37 : vector<8x128xf32>
    %cst_18 = arith.constant dense<0.000000e+00> : vector<8xf32>
    %39 = vector.multi_reduction <add>, %38, %cst_18 [1] : vector<8x128xf32> to vector<8xf32>
    %40 = vector.shape_cast %39 : vector<8xf32> to vector<8x1xf32>
    %41 = arith.mulf %38, %4 : vector<8x128xf32>
    %cst_19 = arith.constant dense<0.000000e+00> : vector<8xf32>
    %42 = vector.multi_reduction <add>, %41, %cst_19 [1] : vector<8x128xf32> to vector<8xf32>
    %43 = vector.shape_cast %42 : vector<8xf32> to vector<8x1xf32>
    %cst_20 = arith.constant 2.100000e+01 : f32
    %44 = vector.broadcast %cst_20 : f32 to vector<8x128xf32>
    %45 = arith.subf %6, %44 : vector<8x128xf32>
    %46 = math.absf %45 : vector<8x128xf32>
    %cst_21 = arith.constant 1.000000e+00 : f32
    %47 = vector.broadcast %cst_21 : f32 to vector<8x128xf32>
    %48 = arith.subf %47, %46 : vector<8x128xf32>
    %cst_22 = arith.constant 0.000000e+00 : f32
    %49 = vector.broadcast %cst_22 : f32 to vector<8x128xf32>
    %50 = arith.maximumf %48, %49 : vector<8x128xf32>
    %cst_23 = arith.constant dense<0.000000e+00> : vector<8xf32>
    %51 = vector.multi_reduction <add>, %50, %cst_23 [1] : vector<8x128xf32> to vector<8xf32>
    %52 = vector.shape_cast %51 : vector<8xf32> to vector<8x1xf32>
    %53 = arith.mulf %50, %4 : vector<8x128xf32>
    %cst_24 = arith.constant dense<0.000000e+00> : vector<8xf32>
    %54 = vector.multi_reduction <add>, %53, %cst_24 [1] : vector<8x128xf32> to vector<8xf32>
    %55 = vector.shape_cast %54 : vector<8xf32> to vector<8x1xf32>
    %cst_25 = arith.constant 2.000000e+01 : f32
    %56 = vector.broadcast %cst_25 : f32 to vector<8x128xf32>
    %57 = arith.subf %6, %56 : vector<8x128xf32>
    %58 = math.absf %57 : vector<8x128xf32>
    %cst_26 = arith.constant 1.000000e+00 : f32
    %59 = vector.broadcast %cst_26 : f32 to vector<8x128xf32>
    %60 = arith.subf %59, %58 : vector<8x128xf32>
    %cst_27 = arith.constant 0.000000e+00 : f32
    %61 = vector.broadcast %cst_27 : f32 to vector<8x128xf32>
    %62 = arith.maximumf %60, %61 : vector<8x128xf32>
    %cst_28 = arith.constant dense<0.000000e+00> : vector<8xf32>
    %63 = vector.multi_reduction <add>, %62, %cst_28 [1] : vector<8x128xf32> to vector<8xf32>
    %64 = vector.shape_cast %63 : vector<8xf32> to vector<8x1xf32>
    %65 = arith.mulf %62, %4 : vector<8x128xf32>
    %cst_29 = arith.constant dense<0.000000e+00> : vector<8xf32>
    %66 = vector.multi_reduction <add>, %65, %cst_29 [1] : vector<8x128xf32> to vector<8xf32>
    %67 = vector.shape_cast %66 : vector<8xf32> to vector<8x1xf32>
    %cst_30 = arith.constant 1.900000e+01 : f32
    %68 = vector.broadcast %cst_30 : f32 to vector<8x128xf32>
    %69 = arith.subf %6, %68 : vector<8x128xf32>
    %70 = math.absf %69 : vector<8x128xf32>
    %cst_31 = arith.constant 1.000000e+00 : f32
    %71 = vector.broadcast %cst_31 : f32 to vector<8x128xf32>
    %72 = arith.subf %71, %70 : vector<8x128xf32>
    %cst_32 = arith.constant 0.000000e+00 : f32
    %73 = vector.broadcast %cst_32 : f32 to vector<8x128xf32>
    %74 = arith.maximumf %72, %73 : vector<8x128xf32>
    %cst_33 = arith.constant dense<0.000000e+00> : vector<8xf32>
    %75 = vector.multi_reduction <add>, %74, %cst_33 [1] : vector<8x128xf32> to vector<8xf32>
    %76 = vector.shape_cast %75 : vector<8xf32> to vector<8x1xf32>
    %77 = arith.mulf %74, %4 : vector<8x128xf32>
    %cst_34 = arith.constant dense<0.000000e+00> : vector<8xf32>
    %78 = vector.multi_reduction <add>, %77, %cst_34 [1] : vector<8x128xf32> to vector<8xf32>
    %79 = vector.shape_cast %78 : vector<8xf32> to vector<8x1xf32>
    %cst_35 = arith.constant 1.800000e+01 : f32
    %80 = vector.broadcast %cst_35 : f32 to vector<8x128xf32>
    %81 = arith.subf %6, %80 : vector<8x128xf32>
    %82 = math.absf %81 : vector<8x128xf32>
    %cst_36 = arith.constant 1.000000e+00 : f32
    %83 = vector.broadcast %cst_36 : f32 to vector<8x128xf32>
    %84 = arith.subf %83, %82 : vector<8x128xf32>
    %cst_37 = arith.constant 0.000000e+00 : f32
    %85 = vector.broadcast %cst_37 : f32 to vector<8x128xf32>
    %86 = arith.maximumf %84, %85 : vector<8x128xf32>
    %cst_38 = arith.constant dense<0.000000e+00> : vector<8xf32>
    %87 = vector.multi_reduction <add>, %86, %cst_38 [1] : vector<8x128xf32> to vector<8xf32>
    %88 = vector.shape_cast %87 : vector<8xf32> to vector<8x1xf32>
    %89 = arith.mulf %86, %4 : vector<8x128xf32>
    %cst_39 = arith.constant dense<0.000000e+00> : vector<8xf32>
    %90 = vector.multi_reduction <add>, %89, %cst_39 [1] : vector<8x128xf32> to vector<8xf32>
    %91 = vector.shape_cast %90 : vector<8xf32> to vector<8x1xf32>
    %cst_40 = arith.constant 1.700000e+01 : f32
    %92 = vector.broadcast %cst_40 : f32 to vector<8x128xf32>
    %93 = arith.subf %6, %92 : vector<8x128xf32>
    %94 = math.absf %93 : vector<8x128xf32>
    %cst_41 = arith.constant 1.000000e+00 : f32
    %95 = vector.broadcast %cst_41 : f32 to vector<8x128xf32>
    %96 = arith.subf %95, %94 : vector<8x128xf32>
    %cst_42 = arith.constant 0.000000e+00 : f32
    %97 = vector.broadcast %cst_42 : f32 to vector<8x128xf32>
    %98 = arith.maximumf %96, %97 : vector<8x128xf32>
    %cst_43 = arith.constant dense<0.000000e+00> : vector<8xf32>
    %99 = vector.multi_reduction <add>, %98, %cst_43 [1] : vector<8x128xf32> to vector<8xf32>
    %100 = vector.shape_cast %99 : vector<8xf32> to vector<8x1xf32>
    %101 = arith.mulf %98, %4 : vector<8x128xf32>
    %cst_44 = arith.constant dense<0.000000e+00> : vector<8xf32>
    %102 = vector.multi_reduction <add>, %101, %cst_44 [1] : vector<8x128xf32> to vector<8xf32>
    %103 = vector.shape_cast %102 : vector<8xf32> to vector<8x1xf32>
    %cst_45 = arith.constant 1.600000e+01 : f32
    %104 = vector.broadcast %cst_45 : f32 to vector<8x128xf32>
    %105 = arith.subf %6, %104 : vector<8x128xf32>
    %106 = math.absf %105 : vector<8x128xf32>
    %cst_46 = arith.constant 1.000000e+00 : f32
    %107 = vector.broadcast %cst_46 : f32 to vector<8x128xf32>
    %108 = arith.subf %107, %106 : vector<8x128xf32>
    %cst_47 = arith.constant 0.000000e+00 : f32
    %109 = vector.broadcast %cst_47 : f32 to vector<8x128xf32>
    %110 = arith.maximumf %108, %109 : vector<8x128xf32>
    %cst_48 = arith.constant dense<0.000000e+00> : vector<8xf32>
    %111 = vector.multi_reduction <add>, %110, %cst_48 [1] : vector<8x128xf32> to vector<8xf32>
    %112 = vector.shape_cast %111 : vector<8xf32> to vector<8x1xf32>
    %113 = arith.mulf %110, %4 : vector<8x128xf32>
    %cst_49 = arith.constant dense<0.000000e+00> : vector<8xf32>
    %114 = vector.multi_reduction <add>, %113, %cst_49 [1] : vector<8x128xf32> to vector<8xf32>
    %115 = vector.shape_cast %114 : vector<8xf32> to vector<8x1xf32>
    %cst_50 = arith.constant 1.500000e+01 : f32
    %116 = vector.broadcast %cst_50 : f32 to vector<8x128xf32>
    %117 = arith.subf %6, %116 : vector<8x128xf32>
    %118 = math.absf %117 : vector<8x128xf32>
    %cst_51 = arith.constant 1.000000e+00 : f32
    %119 = vector.broadcast %cst_51 : f32 to vector<8x128xf32>
    %120 = arith.subf %119, %118 : vector<8x128xf32>
    %cst_52 = arith.constant 0.000000e+00 : f32
    %121 = vector.broadcast %cst_52 : f32 to vector<8x128xf32>
    %122 = arith.maximumf %120, %121 : vector<8x128xf32>
    %cst_53 = arith.constant dense<0.000000e+00> : vector<8xf32>
    %123 = vector.multi_reduction <add>, %122, %cst_53 [1] : vector<8x128xf32> to vector<8xf32>
    %124 = vector.shape_cast %123 : vector<8xf32> to vector<8x1xf32>
    %125 = arith.mulf %122, %4 : vector<8x128xf32>
    %cst_54 = arith.constant dense<0.000000e+00> : vector<8xf32>
    %126 = vector.multi_reduction <add>, %125, %cst_54 [1] : vector<8x128xf32> to vector<8xf32>
    %127 = vector.shape_cast %126 : vector<8xf32> to vector<8x1xf32>
    %cst_55 = arith.constant 1.400000e+01 : f32
    %128 = vector.broadcast %cst_55 : f32 to vector<8x128xf32>
    %129 = arith.subf %6, %128 : vector<8x128xf32>
    %130 = math.absf %129 : vector<8x128xf32>
    %cst_56 = arith.constant 1.000000e+00 : f32
    %131 = vector.broadcast %cst_56 : f32 to vector<8x128xf32>
    %132 = arith.subf %131, %130 : vector<8x128xf32>
    %cst_57 = arith.constant 0.000000e+00 : f32
    %133 = vector.broadcast %cst_57 : f32 to vector<8x128xf32>
    %134 = arith.maximumf %132, %133 : vector<8x128xf32>
    %cst_58 = arith.constant dense<0.000000e+00> : vector<8xf32>
    %135 = vector.multi_reduction <add>, %134, %cst_58 [1] : vector<8x128xf32> to vector<8xf32>
    %136 = vector.shape_cast %135 : vector<8xf32> to vector<8x1xf32>
    %137 = arith.mulf %134, %4 : vector<8x128xf32>
    %cst_59 = arith.constant dense<0.000000e+00> : vector<8xf32>
    %138 = vector.multi_reduction <add>, %137, %cst_59 [1] : vector<8x128xf32> to vector<8xf32>
    %139 = vector.shape_cast %138 : vector<8xf32> to vector<8x1xf32>
    %cst_60 = arith.constant 1.300000e+01 : f32
    %140 = vector.broadcast %cst_60 : f32 to vector<8x128xf32>
    %141 = arith.subf %6, %140 : vector<8x128xf32>
    %142 = math.absf %141 : vector<8x128xf32>
    %cst_61 = arith.constant 1.000000e+00 : f32
    %143 = vector.broadcast %cst_61 : f32 to vector<8x128xf32>
    %144 = arith.subf %143, %142 : vector<8x128xf32>
    %cst_62 = arith.constant 0.000000e+00 : f32
    %145 = vector.broadcast %cst_62 : f32 to vector<8x128xf32>
    %146 = arith.maximumf %144, %145 : vector<8x128xf32>
    %cst_63 = arith.constant dense<0.000000e+00> : vector<8xf32>
    %147 = vector.multi_reduction <add>, %146, %cst_63 [1] : vector<8x128xf32> to vector<8xf32>
    %148 = vector.shape_cast %147 : vector<8xf32> to vector<8x1xf32>
    %149 = arith.mulf %146, %4 : vector<8x128xf32>
    %cst_64 = arith.constant dense<0.000000e+00> : vector<8xf32>
    %150 = vector.multi_reduction <add>, %149, %cst_64 [1] : vector<8x128xf32> to vector<8xf32>
    %151 = vector.shape_cast %150 : vector<8xf32> to vector<8x1xf32>
    %cst_65 = arith.constant 1.200000e+01 : f32
    %152 = vector.broadcast %cst_65 : f32 to vector<8x128xf32>
    %153 = arith.subf %6, %152 : vector<8x128xf32>
    %154 = math.absf %153 : vector<8x128xf32>
    %cst_66 = arith.constant 1.000000e+00 : f32
    %155 = vector.broadcast %cst_66 : f32 to vector<8x128xf32>
    %156 = arith.subf %155, %154 : vector<8x128xf32>
    %cst_67 = arith.constant 0.000000e+00 : f32
    %157 = vector.broadcast %cst_67 : f32 to vector<8x128xf32>
    %158 = arith.maximumf %156, %157 : vector<8x128xf32>
    %cst_68 = arith.constant dense<0.000000e+00> : vector<8xf32>
    %159 = vector.multi_reduction <add>, %158, %cst_68 [1] : vector<8x128xf32> to vector<8xf32>
    %160 = vector.shape_cast %159 : vector<8xf32> to vector<8x1xf32>
    %161 = arith.mulf %158, %4 : vector<8x128xf32>
    %cst_69 = arith.constant dense<0.000000e+00> : vector<8xf32>
    %162 = vector.multi_reduction <add>, %161, %cst_69 [1] : vector<8x128xf32> to vector<8xf32>
    %163 = vector.shape_cast %162 : vector<8xf32> to vector<8x1xf32>
    %cst_70 = arith.constant 1.100000e+01 : f32
    %164 = vector.broadcast %cst_70 : f32 to vector<8x128xf32>
    %165 = arith.subf %6, %164 : vector<8x128xf32>
    %166 = math.absf %165 : vector<8x128xf32>
    %cst_71 = arith.constant 1.000000e+00 : f32
    %167 = vector.broadcast %cst_71 : f32 to vector<8x128xf32>
    %168 = arith.subf %167, %166 : vector<8x128xf32>
    %cst_72 = arith.constant 0.000000e+00 : f32
    %169 = vector.broadcast %cst_72 : f32 to vector<8x128xf32>
    %170 = arith.maximumf %168, %169 : vector<8x128xf32>
    %cst_73 = arith.constant dense<0.000000e+00> : vector<8xf32>
    %171 = vector.multi_reduction <add>, %170, %cst_73 [1] : vector<8x128xf32> to vector<8xf32>
    %172 = vector.shape_cast %171 : vector<8xf32> to vector<8x1xf32>
    %173 = arith.mulf %170, %4 : vector<8x128xf32>
    %cst_74 = arith.constant dense<0.000000e+00> : vector<8xf32>
    %174 = vector.multi_reduction <add>, %173, %cst_74 [1] : vector<8x128xf32> to vector<8xf32>
    %175 = vector.shape_cast %174 : vector<8xf32> to vector<8x1xf32>
    %cst_75 = arith.constant 1.000000e+01 : f32
    %176 = vector.broadcast %cst_75 : f32 to vector<8x128xf32>
    %177 = arith.subf %6, %176 : vector<8x128xf32>
    %178 = math.absf %177 : vector<8x128xf32>
    %cst_76 = arith.constant 1.000000e+00 : f32
    %179 = vector.broadcast %cst_76 : f32 to vector<8x128xf32>
    %180 = arith.subf %179, %178 : vector<8x128xf32>
    %cst_77 = arith.constant 0.000000e+00 : f32
    %181 = vector.broadcast %cst_77 : f32 to vector<8x128xf32>
    %182 = arith.maximumf %180, %181 : vector<8x128xf32>
    %cst_78 = arith.constant dense<0.000000e+00> : vector<8xf32>
    %183 = vector.multi_reduction <add>, %182, %cst_78 [1] : vector<8x128xf32> to vector<8xf32>
    %184 = vector.shape_cast %183 : vector<8xf32> to vector<8x1xf32>
    %185 = arith.mulf %182, %4 : vector<8x128xf32>
    %cst_79 = arith.constant dense<0.000000e+00> : vector<8xf32>
    %186 = vector.multi_reduction <add>, %185, %cst_79 [1] : vector<8x128xf32> to vector<8xf32>
    %187 = vector.shape_cast %186 : vector<8xf32> to vector<8x1xf32>
    %cst_80 = arith.constant 9.000000e+00 : f32
    %188 = vector.broadcast %cst_80 : f32 to vector<8x128xf32>
    %189 = arith.subf %6, %188 : vector<8x128xf32>
    %190 = math.absf %189 : vector<8x128xf32>
    %cst_81 = arith.constant 1.000000e+00 : f32
    %191 = vector.broadcast %cst_81 : f32 to vector<8x128xf32>
    %192 = arith.subf %191, %190 : vector<8x128xf32>
    %cst_82 = arith.constant 0.000000e+00 : f32
    %193 = vector.broadcast %cst_82 : f32 to vector<8x128xf32>
    %194 = arith.maximumf %192, %193 : vector<8x128xf32>
    %cst_83 = arith.constant dense<0.000000e+00> : vector<8xf32>
    %195 = vector.multi_reduction <add>, %194, %cst_83 [1] : vector<8x128xf32> to vector<8xf32>
    %196 = vector.shape_cast %195 : vector<8xf32> to vector<8x1xf32>
    %197 = arith.mulf %194, %4 : vector<8x128xf32>
    %cst_84 = arith.constant dense<0.000000e+00> : vector<8xf32>
    %198 = vector.multi_reduction <add>, %197, %cst_84 [1] : vector<8x128xf32> to vector<8xf32>
    %199 = vector.shape_cast %198 : vector<8xf32> to vector<8x1xf32>
    %cst_85 = arith.constant 8.000000e+00 : f32
    %200 = vector.broadcast %cst_85 : f32 to vector<8x128xf32>
    %201 = arith.subf %6, %200 : vector<8x128xf32>
    %202 = math.absf %201 : vector<8x128xf32>
    %cst_86 = arith.constant 1.000000e+00 : f32
    %203 = vector.broadcast %cst_86 : f32 to vector<8x128xf32>
    %204 = arith.subf %203, %202 : vector<8x128xf32>
    %cst_87 = arith.constant 0.000000e+00 : f32
    %205 = vector.broadcast %cst_87 : f32 to vector<8x128xf32>
    %206 = arith.maximumf %204, %205 : vector<8x128xf32>
    %cst_88 = arith.constant dense<0.000000e+00> : vector<8xf32>
    %207 = vector.multi_reduction <add>, %206, %cst_88 [1] : vector<8x128xf32> to vector<8xf32>
    %208 = vector.shape_cast %207 : vector<8xf32> to vector<8x1xf32>
    %209 = arith.mulf %206, %4 : vector<8x128xf32>
    %cst_89 = arith.constant dense<0.000000e+00> : vector<8xf32>
    %210 = vector.multi_reduction <add>, %209, %cst_89 [1] : vector<8x128xf32> to vector<8xf32>
    %211 = vector.shape_cast %210 : vector<8xf32> to vector<8x1xf32>
    %cst_90 = arith.constant 7.000000e+00 : f32
    %212 = vector.broadcast %cst_90 : f32 to vector<8x128xf32>
    %213 = arith.subf %6, %212 : vector<8x128xf32>
    %214 = math.absf %213 : vector<8x128xf32>
    %cst_91 = arith.constant 1.000000e+00 : f32
    %215 = vector.broadcast %cst_91 : f32 to vector<8x128xf32>
    %216 = arith.subf %215, %214 : vector<8x128xf32>
    %cst_92 = arith.constant 0.000000e+00 : f32
    %217 = vector.broadcast %cst_92 : f32 to vector<8x128xf32>
    %218 = arith.maximumf %216, %217 : vector<8x128xf32>
    %cst_93 = arith.constant dense<0.000000e+00> : vector<8xf32>
    %219 = vector.multi_reduction <add>, %218, %cst_93 [1] : vector<8x128xf32> to vector<8xf32>
    %220 = vector.shape_cast %219 : vector<8xf32> to vector<8x1xf32>
    %221 = arith.mulf %218, %4 : vector<8x128xf32>
    %cst_94 = arith.constant dense<0.000000e+00> : vector<8xf32>
    %222 = vector.multi_reduction <add>, %221, %cst_94 [1] : vector<8x128xf32> to vector<8xf32>
    %223 = vector.shape_cast %222 : vector<8xf32> to vector<8x1xf32>
    %cst_95 = arith.constant 6.000000e+00 : f32
    %224 = vector.broadcast %cst_95 : f32 to vector<8x128xf32>
    %225 = arith.subf %6, %224 : vector<8x128xf32>
    %226 = math.absf %225 : vector<8x128xf32>
    %cst_96 = arith.constant 1.000000e+00 : f32
    %227 = vector.broadcast %cst_96 : f32 to vector<8x128xf32>
    %228 = arith.subf %227, %226 : vector<8x128xf32>
    %cst_97 = arith.constant 0.000000e+00 : f32
    %229 = vector.broadcast %cst_97 : f32 to vector<8x128xf32>
    %230 = arith.maximumf %228, %229 : vector<8x128xf32>
    %cst_98 = arith.constant dense<0.000000e+00> : vector<8xf32>
    %231 = vector.multi_reduction <add>, %230, %cst_98 [1] : vector<8x128xf32> to vector<8xf32>
    %232 = vector.shape_cast %231 : vector<8xf32> to vector<8x1xf32>
    %233 = arith.mulf %230, %4 : vector<8x128xf32>
    %cst_99 = arith.constant dense<0.000000e+00> : vector<8xf32>
    %234 = vector.multi_reduction <add>, %233, %cst_99 [1] : vector<8x128xf32> to vector<8xf32>
    %235 = vector.shape_cast %234 : vector<8xf32> to vector<8x1xf32>
    %cst_100 = arith.constant 5.000000e+00 : f32
    %236 = vector.broadcast %cst_100 : f32 to vector<8x128xf32>
    %237 = arith.subf %6, %236 : vector<8x128xf32>
    %238 = math.absf %237 : vector<8x128xf32>
    %cst_101 = arith.constant 1.000000e+00 : f32
    %239 = vector.broadcast %cst_101 : f32 to vector<8x128xf32>
    %240 = arith.subf %239, %238 : vector<8x128xf32>
    %cst_102 = arith.constant 0.000000e+00 : f32
    %241 = vector.broadcast %cst_102 : f32 to vector<8x128xf32>
    %242 = arith.maximumf %240, %241 : vector<8x128xf32>
    %cst_103 = arith.constant dense<0.000000e+00> : vector<8xf32>
    %243 = vector.multi_reduction <add>, %242, %cst_103 [1] : vector<8x128xf32> to vector<8xf32>
    %244 = vector.shape_cast %243 : vector<8xf32> to vector<8x1xf32>
    %245 = arith.mulf %242, %4 : vector<8x128xf32>
    %cst_104 = arith.constant dense<0.000000e+00> : vector<8xf32>
    %246 = vector.multi_reduction <add>, %245, %cst_104 [1] : vector<8x128xf32> to vector<8xf32>
    %247 = vector.shape_cast %246 : vector<8xf32> to vector<8x1xf32>
    %cst_105 = arith.constant 4.000000e+00 : f32
    %248 = vector.broadcast %cst_105 : f32 to vector<8x128xf32>
    %249 = arith.subf %6, %248 : vector<8x128xf32>
    %250 = math.absf %249 : vector<8x128xf32>
    %cst_106 = arith.constant 1.000000e+00 : f32
    %251 = vector.broadcast %cst_106 : f32 to vector<8x128xf32>
    %252 = arith.subf %251, %250 : vector<8x128xf32>
    %cst_107 = arith.constant 0.000000e+00 : f32
    %253 = vector.broadcast %cst_107 : f32 to vector<8x128xf32>
    %254 = arith.maximumf %252, %253 : vector<8x128xf32>
    %cst_108 = arith.constant dense<0.000000e+00> : vector<8xf32>
    %255 = vector.multi_reduction <add>, %254, %cst_108 [1] : vector<8x128xf32> to vector<8xf32>
    %256 = vector.shape_cast %255 : vector<8xf32> to vector<8x1xf32>
    %257 = arith.mulf %254, %4 : vector<8x128xf32>
    %cst_109 = arith.constant dense<0.000000e+00> : vector<8xf32>
    %258 = vector.multi_reduction <add>, %257, %cst_109 [1] : vector<8x128xf32> to vector<8xf32>
    %259 = vector.shape_cast %258 : vector<8xf32> to vector<8x1xf32>
    %cst_110 = arith.constant 3.000000e+00 : f32
    %260 = vector.broadcast %cst_110 : f32 to vector<8x128xf32>
    %261 = arith.subf %6, %260 : vector<8x128xf32>
    %262 = math.absf %261 : vector<8x128xf32>
    %cst_111 = arith.constant 1.000000e+00 : f32
    %263 = vector.broadcast %cst_111 : f32 to vector<8x128xf32>
    %264 = arith.subf %263, %262 : vector<8x128xf32>
    %cst_112 = arith.constant 0.000000e+00 : f32
    %265 = vector.broadcast %cst_112 : f32 to vector<8x128xf32>
    %266 = arith.maximumf %264, %265 : vector<8x128xf32>
    %cst_113 = arith.constant dense<0.000000e+00> : vector<8xf32>
    %267 = vector.multi_reduction <add>, %266, %cst_113 [1] : vector<8x128xf32> to vector<8xf32>
    %268 = vector.shape_cast %267 : vector<8xf32> to vector<8x1xf32>
    %269 = arith.mulf %266, %4 : vector<8x128xf32>
    %cst_114 = arith.constant dense<0.000000e+00> : vector<8xf32>
    %270 = vector.multi_reduction <add>, %269, %cst_114 [1] : vector<8x128xf32> to vector<8xf32>
    %271 = vector.shape_cast %270 : vector<8xf32> to vector<8x1xf32>
    %cst_115 = arith.constant 2.000000e+00 : f32
    %272 = vector.broadcast %cst_115 : f32 to vector<8x128xf32>
    %273 = arith.subf %6, %272 : vector<8x128xf32>
    %274 = math.absf %273 : vector<8x128xf32>
    %cst_116 = arith.constant 1.000000e+00 : f32
    %275 = vector.broadcast %cst_116 : f32 to vector<8x128xf32>
    %276 = arith.subf %275, %274 : vector<8x128xf32>
    %cst_117 = arith.constant 0.000000e+00 : f32
    %277 = vector.broadcast %cst_117 : f32 to vector<8x128xf32>
    %278 = arith.maximumf %276, %277 : vector<8x128xf32>
    %cst_118 = arith.constant dense<0.000000e+00> : vector<8xf32>
    %279 = vector.multi_reduction <add>, %278, %cst_118 [1] : vector<8x128xf32> to vector<8xf32>
    %280 = vector.shape_cast %279 : vector<8xf32> to vector<8x1xf32>
    %281 = arith.mulf %278, %4 : vector<8x128xf32>
    %cst_119 = arith.constant dense<0.000000e+00> : vector<8xf32>
    %282 = vector.multi_reduction <add>, %281, %cst_119 [1] : vector<8x128xf32> to vector<8xf32>
    %283 = vector.shape_cast %282 : vector<8xf32> to vector<8x1xf32>
    %cst_120 = arith.constant 1.000000e+00 : f32
    %284 = vector.broadcast %cst_120 : f32 to vector<8x128xf32>
    %285 = arith.subf %6, %284 : vector<8x128xf32>
    %286 = math.absf %285 : vector<8x128xf32>
    %cst_121 = arith.constant 1.000000e+00 : f32
    %287 = vector.broadcast %cst_121 : f32 to vector<8x128xf32>
    %288 = arith.subf %287, %286 : vector<8x128xf32>
    %cst_122 = arith.constant 0.000000e+00 : f32
    %289 = vector.broadcast %cst_122 : f32 to vector<8x128xf32>
    %290 = arith.maximumf %288, %289 : vector<8x128xf32>
    %cst_123 = arith.constant dense<0.000000e+00> : vector<8xf32>
    %291 = vector.multi_reduction <add>, %290, %cst_123 [1] : vector<8x128xf32> to vector<8xf32>
    %292 = vector.shape_cast %291 : vector<8xf32> to vector<8x1xf32>
    %293 = arith.mulf %290, %4 : vector<8x128xf32>
    %cst_124 = arith.constant dense<0.000000e+00> : vector<8xf32>
    %294 = vector.multi_reduction <add>, %293, %cst_124 [1] : vector<8x128xf32> to vector<8xf32>
    %295 = vector.shape_cast %294 : vector<8xf32> to vector<8x1xf32>
    %cst_125 = arith.constant 1.000000e+00 : f32
    %296 = vector.broadcast %cst_125 : f32 to vector<8x128xf32>
    %297 = arith.subf %296, %6 : vector<8x128xf32>
    %cst_126 = arith.constant 1.000000e+00 : f32
    %298 = vector.broadcast %cst_126 : f32 to vector<8x128xf32>
    %299 = arith.minimumf %297, %298 : vector<8x128xf32>
    %cst_127 = arith.constant 0.000000e+00 : f32
    %300 = vector.broadcast %cst_127 : f32 to vector<8x128xf32>
    %301 = arith.maximumf %299, %300 : vector<8x128xf32>
    %cst_128 = arith.constant dense<0.000000e+00> : vector<8xf32>
    %302 = vector.multi_reduction <add>, %301, %cst_128 [1] : vector<8x128xf32> to vector<8xf32>
    %303 = vector.shape_cast %302 : vector<8xf32> to vector<8x1xf32>
    %304 = arith.mulf %301, %4 : vector<8x128xf32>
    %cst_129 = arith.constant dense<0.000000e+00> : vector<8xf32>
    %305 = vector.multi_reduction <add>, %304, %cst_129 [1] : vector<8x128xf32> to vector<8xf32>
    %306 = vector.shape_cast %305 : vector<8xf32> to vector<8x1xf32>
    %c0_130 = arith.constant 0 : index
    %c0_131 = arith.constant 0 : index
    %307 = vector.load %arg5[%c0_130, %c0_131] : memref<8x25xf32, #tpu.memory_space<vmem>>, vector<8x25xf32>
    %308 = tpu.concatenate %19, %31, %43, %55, %67, %79, %91, %103, %115, %127, %139, %151, %163, %175, %187, %199 in 1 : vector<8x1xf32>, vector<8x1xf32>, vector<8x1xf32>, vector<8x1xf32>, vector<8x1xf32>, vector<8x1xf32>, vector<8x1xf32>, vector<8x1xf32>, vector<8x1xf32>, vector<8x1xf32>, vector<8x1xf32>, vector<8x1xf32>, vector<8x1xf32>, vector<8x1xf32>, vector<8x1xf32>, vector<8x1xf32> -> vector<8x16xf32>
    %309 = tpu.concatenate %211, %223, %235, %247, %259, %271, %283, %295, %306 in 1 : vector<8x1xf32>, vector<8x1xf32>, vector<8x1xf32>, vector<8x1xf32>, vector<8x1xf32>, vector<8x1xf32>, vector<8x1xf32>, vector<8x1xf32>, vector<8x1xf32> -> vector<8x9xf32>
    %310 = tpu.concatenate %308, %309 in 1 : vector<8x16xf32>, vector<8x9xf32> -> vector<8x25xf32>
    %311 = arith.addf %307, %310 : vector<8x25xf32>
    %c0_132 = arith.constant 0 : index
    %c0_133 = arith.constant 0 : index
    %312 = vector.load %arg5[%c0_132, %c0_133] : memref<8x25xf32, #tpu.memory_space<vmem>>, vector<8x25xf32>
    tpu.vector_store %arg5[%c0_132, %c0_133], %311 {strides = array<i32>} : memref<8x25xf32, #tpu.memory_space<vmem>>, vector<8x25xf32>,
    %c0_134 = arith.constant 0 : index
    %c0_135 = arith.constant 0 : index
    %313 = vector.load %arg6[%c0_134, %c0_135] : memref<8x25xf32, #tpu.memory_space<vmem>>, vector<8x25xf32>
    %314 = tpu.concatenate %16, %28, %40, %52, %64, %76, %88, %100, %112, %124, %136, %148, %160, %172, %184, %196 in 1 : vector<8x1xf32>, vector<8x1xf32>, vector<8x1xf32>, vector<8x1xf32>, vector<8x1xf32>, vector<8x1xf32>, vector<8x1xf32>, vector<8x1xf32>, vector<8x1xf32>, vector<8x1xf32>, vector<8x1xf32>, vector<8x1xf32>, vector<8x1xf32>, vector<8x1xf32>, vector<8x1xf32>, vector<8x1xf32> -> vector<8x16xf32>
    %315 = tpu.concatenate %208, %220, %232, %244, %256, %268, %280, %292, %303 in 1 : vector<8x1xf32>, vector<8x1xf32>, vector<8x1xf32>, vector<8x1xf32>, vector<8x1xf32>, vector<8x1xf32>, vector<8x1xf32>, vector<8x1xf32>, vector<8x1xf32> -> vector<8x9xf32>
    %316 = tpu.concatenate %314, %315 in 1 : vector<8x16xf32>, vector<8x9xf32> -> vector<8x25xf32>
    %317 = arith.addf %313, %316 : vector<8x25xf32>
    %c0_136 = arith.constant 0 : index
    %c0_137 = arith.constant 0 : index
    %318 = vector.load %arg6[%c0_136, %c0_137] : memref<8x25xf32, #tpu.memory_space<vmem>>, vector<8x25xf32>
    tpu.vector_store %arg6[%c0_136, %c0_137], %317 {strides = array<i32>} : memref<8x25xf32, #tpu.memory_space<vmem>>, vector<8x25xf32>,
    %c1_i32 = arith.constant 1 : i32
    %319 = arith.cmpi eq, %arg1, %c1_i32 : i32
    %320 = arith.extui %319 : i1 to i32
    %c0_i32_138 = arith.constant 0 : i32
    %321 = arith.cmpi ne, %320, %c0_i32_138 : i32
    scf.if %321 {
      %c0_139 = arith.constant 0 : index
      %c0_140 = arith.constant 0 : index
      %322 = vector.load %arg5[%c0_139, %c0_140] : memref<8x25xf32, #tpu.memory_space<vmem>>, vector<8x25xf32>
      %c0_141 = arith.constant 0 : index
      %c0_142 = arith.constant 0 : index
      %323 = vector.load %arg6[%c0_141, %c0_142] : memref<8x25xf32, #tpu.memory_space<vmem>>, vector<8x25xf32>
      %324 = tpu.iota {dimensions = array<i32: 0>} : vector<25x25xi32>
      %325 = tpu.iota {dimensions = array<i32: 1>} : vector<25x25xi32>
      %326 = arith.cmpi sle, %324, %325 : vector<25x25xi32>
      %327 = arith.extui %326 : vector<25x25xi1> to vector<25x25xi32>
      %328 = arith.sitofp %327 : vector<25x25xi32> to vector<25x25xf32>
      %cst_143 = arith.constant dense<0.000000e+00> : vector<8x25xf32>
      %329 = tpu.matmul %322, %328, %cst_143 {dimension_numbers = #tpu.dot_dimension_numbers<[1], [0], [0], [1], [0, 0, 1, 1], [], []>} : vector<8x25xf32>, vector<25x25xf32>, vector<8x25xf32> -> vector<8x25xf32>
      %cst_144 = arith.constant dense<0.000000e+00> : vector<8x25xf32>
      %330 = tpu.matmul %323, %328, %cst_144 {dimension_numbers = #tpu.dot_dimension_numbers<[1], [0], [0], [1], [0, 0, 1, 1], [], []>} : vector<8x25xf32>, vector<25x25xf32>, vector<8x25xf32> -> vector<8x25xf32>
      %cst_145 = arith.constant 1.000000e-16 : f32
      %331 = vector.broadcast %cst_145 : f32 to vector<8x25xf32>
      %332 = arith.addf %331, %330 : vector<8x25xf32>
      %333 = tpu.reciprocal %332 {approx = true} : vector<8x25xf32> -> vector<8x25xf32>
      %334 = arith.mulf %332, %333 : vector<8x25xf32>
      %cst_146 = arith.constant 2.000000e+00 : f32
      %335 = vector.broadcast %cst_146 : f32 to vector<8x25xf32>
      %336 = arith.subf %335, %334 : vector<8x25xf32>
      %337 = arith.mulf %333, %336 : vector<8x25xf32>
      %338 = arith.mulf %329, %337 : vector<8x25xf32>
      %339 = vector.extract_strided_slice %329 {offsets = [0, 24], sizes = [8, 1], strides = [1, 1]} : vector<8x25xf32> to vector<8x1xf32>
      %340 = arith.mulf %338, %322 : vector<8x25xf32>
      %341 = tpu.reciprocal %339 {approx = true} : vector<8x1xf32> -> vector<8x1xf32>
      %342 = arith.mulf %339, %341 : vector<8x1xf32>
      %cst_147 = arith.constant 2.000000e+00 : f32
      %343 = vector.broadcast %cst_147 : f32 to vector<8x1xf32>
      %344 = arith.subf %343, %342 : vector<8x1xf32>
      %345 = arith.mulf %341, %344 : vector<8x1xf32>
      %346 = vector.broadcast %345 : vector<8x1xf32> to vector<8x25xf32>
      %347 = arith.mulf %340, %346 : vector<8x25xf32>
      %cst_148 = arith.constant dense<0.000000e+00> : vector<8xf32>
      %348 = vector.multi_reduction <add>, %347, %cst_148 [1] : vector<8x25xf32> to vector<8xf32>
      %349 = vector.shape_cast %348 : vector<8xf32> to vector<8x1xf32>
      %c0_149 = arith.constant 0 : index
      %c0_150 = arith.constant 0 : index
      %350 = vector.load %arg4[%c0_149, %c0_150] : memref<8x1xf32, #tpu.memory_space<vmem>>, vector<8x1xf32>
      tpu.vector_store %arg4[%c0_149, %c0_150], %349 {strides = array<i32>} : memref<8x1xf32, #tpu.memory_space<vmem>>, vector<8x1xf32>,
    } else {
    }
    return
  }
  func.func @transform_0(%arg0: i32, %arg1: i32) -> (i32, i32) {
    %c0_i32 = arith.constant 0 : i32
    return %arg0, %arg1 : i32, i32
  }
  func.func @transform_1(%arg0: i32, %arg1: i32) -> (i32, i32) {
    %c0_i32 = arith.constant 0 : i32
    return %arg0, %arg1 : i32, i32
  }
  func.func @transform_2(%arg0: i32, %arg1: i32) -> (i32, i32) {
    %c0_i32 = arith.constant 0 : i32
    %c0_i32_0 = arith.constant 0 : i32
    return %arg0, %c0_i32 : i32, i32
  }
}

</mosaic_0001>

<llo_original>
// kernel: tpu_custom_call.1
$region0: #{tpu_custom_call.1}
  #allocation0 [shape = 'u32[]', space=smem, size = 0x4, offset = 0x4, fixed_abs, tag = 'smem constant byte address 0x4 - core index']
  #allocation1 [shape = 'u32[144,128]{1,0:T(1,128)}', space=vmem, size = 0x12000, scoped, tag = 'internal scratch']
  #allocation2 [shape = 'f32[8,25]{1,0:T(8,128)}', space=vmem, size = 0x1000, scoped, tag = 'scratch operand']
  #allocation3 [shape = 'f32[8,25]{1,0:T(8,128)}', space=vmem, size = 0x1000, scoped, tag = 'scratch operand']
  %s0 = inlined_call_operand.hbm [shape: f32[16,256], index: 0, kind: input, shape index: {}]
  %s1 = inlined_call_operand.hbm [shape: f32[16,256], index: 1, kind: input, shape index: {}]
  %s2 = inlined_call_operand.vmem [shape: f32[16,1], index: 2, kind: output, shape index: {}]
  %s3 = sld [smem:[#allocation0]]
  $region57: #{tpu_custom_call.1} parent=0
    _
  %s5 = ssub.s32 1, %s3
  %s6 = scalar_select 0, %s5, %s3
  $region1: #{tpu_custom_call.1} parent=0
    #allocation4 [shape = 'u8[8192]{0}', space=vmem, size = 0x2000, scoped, tag = 'input window, operand 0']
    #allocation5 [shape = 's32[2]{0}', space=sflag, size = 0x8, scoped, tag = 'scoped memory for tpu_custom_call.1']
    #allocation6 [shape = 'u8[8192]{0}', space=vmem, size = 0x2000, scoped, tag = 'input window, operand 1']
    #allocation7 [shape = 's32[2]{0}', space=sflag, size = 0x8, scoped, tag = 'scoped memory for tpu_custom_call.1']
    %7 = vsyncpa [#allocation5], 0
    %s8 = scalar_lea.sflag [#allocation5], 1
    %9 = vsyncpa %s8, 0
    %10 = vsyncpa [#allocation7], 0
    %s11 = scalar_lea.sflag [#allocation7], 1
    %12 = vsyncpa %s11, 0
    loop: start=0, step=1, limit=6
    $region2: #{tpu_custom_call.1} parent=1 // loop_pre_header
      _
    $region3: #{tpu_custom_call.1} parent=1 // loop_header
      %s14 = sphi 0, %s18
      %p15 = scmp.ge.s32.totalorder %s14, 6
      %s21 = sphi 0, %s33
      %s22 = sphi 0, %s29
      %s23 = sphi 0, %s21
      %s24 = sphi 0, %s22
      %s25 = sphi 0, %s23
      %s26 = sphi 0, %s24
      %s38 = sphi 0, %s40
      %s41 = sphi 0, %s38
      %s42 = sphi 0, %s41
      %s58 = sphi 0, %s42
      %s66 = sphi 0, %s68
      %s69 = sphi 0, %s66
      %s70 = sphi 0, %s69
      %s86 = sphi 0, %s70
      %s92 = sphi 0, %s94
      %s95 = sphi 0, %s92
      %s96 = sphi 0, %s95
      %s112 = sphi 0, %s96
    $region4: #{tpu_custom_call.1} parent=1 // loop_header_branch
      %17 = sbr.rel (%p15) target = $region8
    $region5: #{tpu_custom_call.1} parent=1 // loop_body
      %s19 = ssub.s32 %s14, 1
      %s20 = ssub.s32 %s14, 2
      %s27 = sadd.s32 1, %s22
      %p28 = scmp.ge.s32.totalorder %s27, 2
      %s29 = scalar_select %p28, 0, %s27
      %s30 = sadd.s32 1, %s21
      %s31 = scalar_select %p28, %s30, %s21
      %p32 = scmp.ge.s32.totalorder %s31, 2
      %s33 = scalar_select %p32, 0, %s31
      %s34 = ssub.s32 %s21, %s33
      %s35 = ssub.s32 %s22, %s29
      %s36 = sor.u32 %s34, %s35
      %p37 = scmp.eq.s32.totalorder %s36, 0
      %s39 = sadd.s32 %s38, 1
      %s40 = scalar_select %p37, %s38, %s39
      %p43 = pneg %p37
      %p44 = scmp.eq.s32.totalorder %s14, 3
      %p45 = por %p43, %p44
      %p46 = scmp.ne.s32.totalorder %s38, %s41
      %p47 = scmp.eq.s32.totalorder %s14, 0
      %p48 = por %p46, %p47
      %p49 = scmp.ne.s32.totalorder %s38, %s41
      %p50 = scmp.eq.s32.totalorder %s19, 3
      %p51 = por %p49, %p50
      %p52 = scmp.ne.s32.totalorder %s41, %s42
      %p53 = scmp.eq.s32.totalorder %s19, 0
      %p54 = por %p52, %p53
      %p55 = scmp.ne.s32.totalorder %s41, %s42
      %p56 = scmp.eq.s32.totalorder %s20, 3
      %p57 = por %p55, %p56
      %p59 = scmp.ne.s32.totalorder %s42, %s58
      %p60 = scmp.eq.s32.totalorder %s20, 0
      %p61 = por %p59, %p60
      %s62 = ssub.s32 %s21, %s33
      %s63 = ssub.s32 %s22, %s29
      %s64 = sor.u32 %s62, %s63
      %p65 = scmp.eq.s32.totalorder %s64, 0
      %s67 = sadd.s32 %s66, 1
      %s68 = scalar_select %p65, %s66, %s67
      %p71 = pneg %p65
      %p72 = scmp.eq.s32.totalorder %s14, 3
      %p73 = por %p71, %p72
      %p74 = scmp.ne.s32.totalorder %s66, %s69
      %p75 = scmp.eq.s32.totalorder %s14, 0
      %p76 = por %p74, %p75
      %p77 = scmp.ne.s32.totalorder %s66, %s69
      %p78 = scmp.eq.s32.totalorder %s19, 3
      %p79 = por %p77, %p78
      %p80 = scmp.ne.s32.totalorder %s69, %s70
      %p81 = scmp.eq.s32.totalorder %s19, 0
      %p82 = por %p80, %p81
      %p83 = scmp.ne.s32.totalorder %s69, %s70
      %p84 = scmp.eq.s32.totalorder %s20, 3
      %p85 = por %p83, %p84
      %p87 = scmp.ne.s32.totalorder %s70, %s86
      %p88 = scmp.eq.s32.totalorder %s20, 0
      %p89 = por %p87, %p88
      %s90 = ssub.s32 %s21, %s33
      %p91 = scmp.eq.s32.totalorder %s90, 0
      %s93 = sadd.s32 %s92, 1
      %s94 = scalar_select %p91, %s92, %s93
      %p97 = pneg %p91
      %p98 = scmp.eq.s32.totalorder %s14, 3
      %p99 = por %p97, %p98
      %p100 = scmp.ne.s32.totalorder %s92, %s95
      %p101 = scmp.eq.s32.totalorder %s14, 0
      %p102 = por %p100, %p101
      %p103 = scmp.ne.s32.totalorder %s92, %s95
      %p104 = scmp.eq.s32.totalorder %s19, 3
      %p105 = por %p103, %p104
      %p106 = scmp.ne.s32.totalorder %s95, %s96
      %p107 = scmp.eq.s32.totalorder %s19, 0
      %p108 = por %p106, %p107
      %p109 = scmp.ne.s32.totalorder %s95, %s96
      %p110 = scmp.eq.s32.totalorder %s20, 3
      %p111 = por %p109, %p110
      %p113 = scmp.ne.s32.totalorder %s96, %s112
      %p114 = scmp.eq.s32.totalorder %s20, 0
      %p115 = por %p113, %p114
      %p116 = scmp.le.s32.totalorder 1, %s14
      %p117 = scmp.lt.s32.totalorder %s14, 5
      %p118 = pnand %p116, %p117
      %p119 = pneg %p118
      // Predicated region
      $region9: #{tpu_custom_call.1} parent=5 // pred_check
        _
      $region10: #{tpu_custom_call.1} parent=5 // pred_check_branch
        %121 = sbr.rel (%p118) target = $region12
      $region11: #{tpu_custom_call.1} parent=5 // pred_region
        %s122 = ssub.s32 %s14, 1
      $region12: #{tpu_custom_call.1} parent=5 // pred_fallthru
        _
      %p123 = scmp.lt.s32.totalorder %s14, 4
      // Predicated region
      $region13: #{tpu_custom_call.1} parent=5 // pred_check
        %p124 = pneg %p123
      $region14: #{tpu_custom_call.1} parent=5 // pred_check_branch
        %126 = sbr.rel (%p124) target = $region16
      $region15: #{tpu_custom_call.1} parent=5 // pred_region
        // Predicated region
        $region17: #{tpu_custom_call.1} parent=15 // pred_check
          %p127 = pneg %p48
        $region18: #{tpu_custom_call.1} parent=15 // pred_check_branch
          %129 = sbr.rel (%p127) target = $region20
        $region19: #{tpu_custom_call.1} parent=15 // pred_region
          %s130 = sand.u32 %s38, 1
          %s131 = scalar_lea.sflag [#allocation5], %s130
          %s132 = sand.u32 %s38, 1
          %s133 = smul.addr %s132, 8
          %s134 = scalar_lea.vmem [#allocation4], %s133
          %s136 = ssub.s32 128, 128
          %137 = vsyncadd %s131, %s136
          %s138 = smul.addr %s21, 2
          %s139 = sadd.s32 %s22, %s138
          %s140 = smul.addr %s139, 128
          %s141 = scalar_lea.hbm %s0, %s140
          %s143 = sshll.u32 %s134, 4
          %s144 = int_to_ptr.vmem [resolvable:$true] %s143
          %146 = dma.hbm_to_vmem [thread:$0]  %s141, 128, %s144, %s131
        $region20: #{tpu_custom_call.1} parent=15 // pred_fallthru
          _
        // Predicated region
        $region21: #{tpu_custom_call.1} parent=15 // pred_check
          %p147 = pneg %p76
        $region22: #{tpu_custom_call.1} parent=15 // pred_check_branch
          %149 = sbr.rel (%p147) target = $region24
        $region23: #{tpu_custom_call.1} parent=15 // pred_region
          %s150 = sand.u32 %s66, 1
          %s151 = scalar_lea.sflag [#allocation7], %s150
          %s152 = sand.u32 %s66, 1
          %s153 = smul.addr %s152, 8
          %s154 = scalar_lea.vmem [#allocation6], %s153
          %s156 = ssub.s32 128, 128
          %157 = vsyncadd %s151, %s156
          %s158 = smul.addr %s21, 2
          %s159 = sadd.s32 %s22, %s158
          %s160 = smul.addr %s159, 128
          %s161 = scalar_lea.hbm %s1, %s160
          %s163 = sshll.u32 %s154, 4
          %s164 = int_to_ptr.vmem [resolvable:$true] %s163
          %166 = dma.hbm_to_vmem [thread:$0]  %s161, 128, %s164, %s151
        $region24: #{tpu_custom_call.1} parent=15 // pred_fallthru
          _
      $region16: #{tpu_custom_call.1} parent=5 // pred_fallthru
        _
      %p167 = scmp.le.s32.totalorder 1, %s14
      %p168 = scmp.lt.s32.totalorder %s14, 5
      %p169 = pnand %p167, %p168
      %p170 = pneg %p169
      // Predicated region
      $region25: #{tpu_custom_call.1} parent=5 // pred_check
        _
      $region26: #{tpu_custom_call.1} parent=5 // pred_check_branch
        %172 = sbr.rel (%p169) target = $region28
      $region27: #{tpu_custom_call.1} parent=5 // pred_region
        %s173 = ssub.s32 %s14, 1
        %s174 = sand.u32 %s41, 1
        %s175 = scalar_lea.sflag [#allocation5], %s174
        %s176 = sand.u32 %s41, 1
        %s177 = smul.addr %s176, 8
        %s178 = scalar_lea.vmem [#allocation4], %s177
        // Predicated region
        $region29: #{tpu_custom_call.1} parent=27 // pred_check
          %p179 = pneg %p54
        $region30: #{tpu_custom_call.1} parent=27 // pred_check_branch
          %181 = sbr.rel (%p179) target = $region32
        $region31: #{tpu_custom_call.1} parent=27 // pred_region
          %182 = dma.done %s175, 128
        $region32: #{tpu_custom_call.1} parent=27 // pred_fallthru
          _
        %s183 = sand.u32 %s69, 1
        %s184 = scalar_lea.sflag [#allocation7], %s183
        %s185 = sand.u32 %s69, 1
        %s186 = smul.addr %s185, 8
        %s187 = scalar_lea.vmem [#allocation6], %s186
        // Predicated region
        $region33: #{tpu_custom_call.1} parent=27 // pred_check
          %p188 = pneg %p82
        $region34: #{tpu_custom_call.1} parent=27 // pred_check_branch
          %190 = sbr.rel (%p188) target = $region36
        $region35: #{tpu_custom_call.1} parent=27 // pred_region
          %191 = dma.done %s184, 128
        $region36: #{tpu_custom_call.1} parent=27 // pred_fallthru
          _
        %s192 = sand.u32 %s41, 1
        %s193 = scalar_lea.sflag [#allocation5], %s192
        %s194 = sand.u32 %s41, 1
        %s195 = smul.addr %s194, 8
        %s196 = scalar_lea.vmem [#allocation4], %s195
        %p197 = pneg %p54
        %p198 = pneg %p51
        %s199 = sand.u32 %s69, 1
        %s200 = scalar_lea.sflag [#allocation7], %s199
        %s201 = sand.u32 %s69, 1
        %s202 = smul.addr %s201, 8
        %s203 = scalar_lea.vmem [#allocation6], %s202
        %p204 = pneg %p82
        %p205 = pneg %p79
        %p206 = pneg %p108
        %p207 = pneg %p105
        %p208 = scmp.lt.s32.totalorder %s23, 1
        %s209 = scalar_select %p208, %s23, 1
        %s210 = smul.addr %s209, 8
        %s211 = scalar_lea.vmem %s2, %s210
        %p212 = scmp.lt.s32.totalorder %s23, 1
        %s213 = scalar_select %p212, %s23, 1
        %s214 = smul.addr %s213, 8
        %s215 = scalar_lea.vmem %s2, %s214
        %p216 = scmp.eq.s32.totalorder %s24, 0
        // Predicated region
        $region37: #{tpu_custom_call.1} parent=27 // pred_check
          %p217 = pneg %p216
        $region38: #{tpu_custom_call.1} parent=27 // pred_check_branch
          %219 = sbr.rel (%p217) target = $region40
        $region39: #{tpu_custom_call.1} parent=27 // pred_region
          %vm220 = vcmask 203776
          %221 = vst.msk [vmem:[#allocation2] sm:$0xff] %vm220, 0.0
          %222 = vst.msk [vmem:[#allocation3] sm:$0xff] %vm220, 0.0
        $region40: #{tpu_custom_call.1} parent=27 // pred_fallthru
          _
        %v223 = vld [vmem:[%s178] sm:$0xff]
        %v224 = vld [vmem:[%s187] sm:$0xff]
        %v225 = vmul.f32 %v223, 24.0
        %v226 = vsub.f32 %v225, 24.0
        %v227 = vadd.f32 %v226, 1.0
        %v228 = vmin.f32 %v227, 1.0
        %v229 = vmax.f32 %v228, 0.0
        %230 = vadd.xlane.f32.xlu0 %v229
        %v231 = vpop.xlane.xlu0 %230
        %v232 = vmul.f32 %v229, %v224
        %233 = vadd.xlane.f32.xlu0 %v232
        %v234 = vpop.xlane.xlu0 %233
        %v235 = vsub.f32 %v225, 23.0
        %v236 = vand.u32 2147483647, %v235
        %v237 = vsub.f32 1.0, %v236
        %v238 = vmax.f32 %v237, 0.0
        %239 = vadd.xlane.f32.xlu0 %v238
        %v240 = vpop.xlane.xlu0 %239
        %v241 = vmul.f32 %v238, %v224
        %242 = vadd.xlane.f32.xlu0 %v241
        %v243 = vpop.xlane.xlu0 %242
        %v244 = vsub.f32 %v225, 22.0
        %v245 = vand.u32 2147483647, %v244
        %v246 = vsub.f32 1.0, %v245
        %v247 = vmax.f32 %v246, 0.0
        %248 = vadd.xlane.f32.xlu0 %v247
        %v249 = vpop.xlane.xlu0 %248
        %v250 = vmul.f32 %v247, %v224
        %251 = vadd.xlane.f32.xlu0 %v250
        %v252 = vpop.xlane.xlu0 %251
        %v253 = vsub.f32 %v225, 21.0
        %v254 = vand.u32 2147483647, %v253
        %v255 = vsub.f32 1.0, %v254
        %v256 = vmax.f32 %v255, 0.0
        %257 = vadd.xlane.f32.xlu0 %v256
        %v258 = vpop.xlane.xlu0 %257
        %v259 = vmul.f32 %v256, %v224
        %260 = vadd.xlane.f32.xlu0 %v259
        %v261 = vpop.xlane.xlu0 %260
        %v262 = vsub.f32 %v225, 20.0
        %v263 = vand.u32 2147483647, %v262
        %v264 = vsub.f32 1.0, %v263
        %v265 = vmax.f32 %v264, 0.0
        %266 = vadd.xlane.f32.xlu0 %v265
        %v267 = vpop.xlane.xlu0 %266
        %v268 = vmul.f32 %v265, %v224
        %269 = vadd.xlane.f32.xlu0 %v268
        %v270 = vpop.xlane.xlu0 %269
        %v271 = vsub.f32 %v225, 19.0
        %v272 = vand.u32 2147483647, %v271
        %v273 = vsub.f32 1.0, %v272
        %v274 = vmax.f32 %v273, 0.0
        %275 = vadd.xlane.f32.xlu0 %v274
        %v276 = vpop.xlane.xlu0 %275
        %v277 = vmul.f32 %v274, %v224
        %278 = vadd.xlane.f32.xlu0 %v277
        %v279 = vpop.xlane.xlu0 %278
        %v280 = vsub.f32 %v225, 18.0
        %v281 = vand.u32 2147483647, %v280
        %v282 = vsub.f32 1.0, %v281
        %v283 = vmax.f32 %v282, 0.0
        %284 = vadd.xlane.f32.xlu0 %v283
        %v285 = vpop.xlane.xlu0 %284
        %v286 = vmul.f32 %v283, %v224
        %287 = vadd.xlane.f32.xlu0 %v286
        %v288 = vpop.xlane.xlu0 %287
        %v289 = vsub.f32 %v225, 17.0
        %v290 = vand.u32 2147483647, %v289
        %v291 = vsub.f32 1.0, %v290
        %v292 = vmax.f32 %v291, 0.0
        %293 = vadd.xlane.f32.xlu0 %v292
        %v294 = vpop.xlane.xlu0 %293
        %v295 = vmul.f32 %v292, %v224
        %296 = vadd.xlane.f32.xlu0 %v295
        %v297 = vpop.xlane.xlu0 %296
        %v298 = vsub.f32 %v225, 16.0
        %v299 = vand.u32 2147483647, %v298
        %v300 = vsub.f32 1.0, %v299
        %v301 = vmax.f32 %v300, 0.0
        %302 = vadd.xlane.f32.xlu0 %v301
        %v303 = vpop.xlane.xlu0 %302
        %v304 = vmul.f32 %v301, %v224
        %305 = vadd.xlane.f32.xlu0 %v304
        %v306 = vpop.xlane.xlu0 %305
        %v307 = vsub.f32 %v225, 15.0
        %v308 = vand.u32 2147483647, %v307
        %v309 = vsub.f32 1.0, %v308
        %v310 = vmax.f32 %v309, 0.0
        %311 = vadd.xlane.f32.xlu0 %v310
        %v312 = vpop.xlane.xlu0 %311
        %v313 = vmul.f32 %v310, %v224
        %314 = vadd.xlane.f32.xlu0 %v313
        %v315 = vpop.xlane.xlu0 %314
        %v316 = vsub.f32 %v225, 14.0
        %v317 = vand.u32 2147483647, %v316
        %v318 = vsub.f32 1.0, %v317
        %v319 = vmax.f32 %v318, 0.0
        %320 = vadd.xlane.f32.xlu0 %v319
        %v321 = vpop.xlane.xlu0 %320
        %v322 = vmul.f32 %v319, %v224
        %323 = vadd.xlane.f32.xlu0 %v322
        %v324 = vpop.xlane.xlu0 %323
        %v325 = vsub.f32 %v225, 13.0
        %v326 = vand.u32 2147483647, %v325
        %v327 = vsub.f32 1.0, %v326
        %v328 = vmax.f32 %v327, 0.0
        %329 = vadd.xlane.f32.xlu0 %v328
        %v330 = vpop.xlane.xlu0 %329
        %v331 = vmul.f32 %v328, %v224
        %332 = vadd.xlane.f32.xlu0 %v331
        %v333 = vpop.xlane.xlu0 %332
        %v334 = vsub.f32 %v225, 12.0
        %v335 = vand.u32 2147483647, %v334
        %v336 = vsub.f32 1.0, %v335
        %v337 = vmax.f32 %v336, 0.0
        %338 = vadd.xlane.f32.xlu0 %v337
        %v339 = vpop.xlane.xlu0 %338
        %v340 = vmul.f32 %v337, %v224
        %341 = vadd.xlane.f32.xlu0 %v340
        %v342 = vpop.xlane.xlu0 %341
        %v343 = vsub.f32 %v225, 11.0
        %v344 = vand.u32 2147483647, %v343
        %v345 = vsub.f32 1.0, %v344
        %v346 = vmax.f32 %v345, 0.0
        %347 = vadd.xlane.f32.xlu0 %v346
        %v348 = vpop.xlane.xlu0 %347
        %v349 = vmul.f32 %v346, %v224
        %350 = vadd.xlane.f32.xlu0 %v349
        %v351 = vpop.xlane.xlu0 %350
        %v352 = vsub.f32 %v225, 10.0
        %v353 = vand.u32 2147483647, %v352
        %v354 = vsub.f32 1.0, %v353
        %v355 = vmax.f32 %v354, 0.0
        %356 = vadd.xlane.f32.xlu0 %v355
        %v357 = vpop.xlane.xlu0 %356
        %v358 = vmul.f32 %v355, %v224
        %359 = vadd.xlane.f32.xlu0 %v358
        %v360 = vpop.xlane.xlu0 %359
        %v361 = vsub.f32 %v225, 9.0
        %v362 = vand.u32 2147483647, %v361
        %v363 = vsub.f32 1.0, %v362
        %v364 = vmax.f32 %v363, 0.0
        %365 = vadd.xlane.f32.xlu0 %v364
        %v366 = vpop.xlane.xlu0 %365
        %v367 = vmul.f32 %v364, %v224
        %368 = vadd.xlane.f32.xlu0 %v367
        %v369 = vpop.xlane.xlu0 %368
        %v370 = vsub.f32 %v225, 8.0
        %v371 = vand.u32 2147483647, %v370
        %v372 = vsub.f32 1.0, %v371
        %v373 = vmax.f32 %v372, 0.0
        %374 = vadd.xlane.f32.xlu0 %v373
        %v375 = vpop.xlane.xlu0 %374
        %v376 = vmul.f32 %v373, %v224
        %377 = vadd.xlane.f32.xlu0 %v376
        %v378 = vpop.xlane.xlu0 %377
        %v379 = vsub.f32 %v225, 7.0
        %v380 = vand.u32 2147483647, %v379
        %v381 = vsub.f32 1.0, %v380
        %v382 = vmax.f32 %v381, 0.0
        %383 = vadd.xlane.f32.xlu0 %v382
        %v384 = vpop.xlane.xlu0 %383
        %v385 = vmul.f32 %v382, %v224
        %386 = vadd.xlane.f32.xlu0 %v385
        %v387 = vpop.xlane.xlu0 %386
        %v388 = vsub.f32 %v225, 6.0
        %v389 = vand.u32 2147483647, %v388
        %v390 = vsub.f32 1.0, %v389
        %v391 = vmax.f32 %v390, 0.0
        %392 = vadd.xlane.f32.xlu0 %v391
        %v393 = vpop.xlane.xlu0 %392
        %v394 = vmul.f32 %v391, %v224
        %395 = vadd.xlane.f32.xlu0 %v394
        %v396 = vpop.xlane.xlu0 %395
        %v397 = vsub.f32 %v225, 5.0
        %v398 = vand.u32 2147483647, %v397
        %v399 = vsub.f32 1.0, %v398
        %v400 = vmax.f32 %v399, 0.0
        %401 = vadd.xlane.f32.xlu0 %v400
        %v402 = vpop.xlane.xlu0 %401
        %v403 = vmul.f32 %v400, %v224
        %404 = vadd.xlane.f32.xlu0 %v403
        %v405 = vpop.xlane.xlu0 %404
        %v406 = vsub.f32 %v225, 4.0
        %v407 = vand.u32 2147483647, %v406
        %v408 = vsub.f32 1.0, %v407
        %v409 = vmax.f32 %v408, 0.0
        %410 = vadd.xlane.f32.xlu0 %v409
        %v411 = vpop.xlane.xlu0 %410
        %v412 = vmul.f32 %v409, %v224
        %413 = vadd.xlane.f32.xlu0 %v412
        %v414 = vpop.xlane.xlu0 %413
        %v415 = vsub.f32 %v225, 3.0
        %v416 = vand.u32 2147483647, %v415
        %v417 = vsub.f32 1.0, %v416
        %v418 = vmax.f32 %v417, 0.0
        %419 = vadd.xlane.f32.xlu0 %v418
        %v420 = vpop.xlane.xlu0 %419
        %v421 = vmul.f32 %v418, %v224
        %422 = vadd.xlane.f32.xlu0 %v421
        %v423 = vpop.xlane.xlu0 %422
        %v424 = vsub.f32 %v225, 2.0
        %v425 = vand.u32 2147483647, %v424
        %v426 = vsub.f32 1.0, %v425
        %v427 = vmax.f32 %v426, 0.0
        %428 = vadd.xlane.f32.xlu0 %v427
        %v429 = vpop.xlane.xlu0 %428
        %v430 = vmul.f32 %v427, %v224
        %431 = vadd.xlane.f32.xlu0 %v430
        %v432 = vpop.xlane.xlu0 %431
        %v433 = vsub.f32 %v225, 1.0
        %v434 = vand.u32 2147483647, %v433
        %v435 = vsub.f32 1.0, %v434
        %v436 = vmax.f32 %v435, 0.0
        %437 = vadd.xlane.f32.xlu0 %v436
        %v438 = vpop.xlane.xlu0 %437
        %v439 = vmul.f32 %v436, %v224
        %440 = vadd.xlane.f32.xlu0 %v439
        %v441 = vpop.xlane.xlu0 %440
        %v442 = vsub.f32 1.0, %v225
        %v443 = vmin.f32 %v442, 1.0
        %v444 = vmax.f32 %v443, 0.0
        %445 = vadd.xlane.f32.xlu0 %v444
        %v446 = vpop.xlane.xlu0 %445
        %v447 = vmul.f32 %v444, %v224
        %448 = vadd.xlane.f32.xlu0 %v447
        %v449 = vpop.xlane.xlu0 %448
        %v450 = vld [vmem:[#allocation2] sm:$0xff]
        %vm451 = vcmask 7168
        %v452 = vsel %vm451, %v234, %v243
        %vm453 = vcmask 15360
        %v454 = vsel %vm453, %v452, %v252
        %vm455 = vcmask 23552
        %v456 = vsel %vm455, %v454, %v261
        %vm457 = vcmask 31744
        %v458 = vsel %vm457, %v456, %v270
        %vm459 = vcmask 39936
        %v460 = vsel %vm459, %v458, %v279
        %vm461 = vcmask 48128
        %v462 = vsel %vm461, %v460, %v288
        %vm463 = vcmask 56320
        %v464 = vsel %vm463, %v462, %v297
        %vm465 = vcmask 64512
        %v466 = vsel %vm465, %v464, %v306
        %vm467 = vcmask 72704
        %v468 = vsel %vm467, %v466, %v315
        %vm469 = vcmask 80896
        %v470 = vsel %vm469, %v468, %v324
        %vm471 = vcmask 89088
        %v472 = vsel %vm471, %v470, %v333
        %vm473 = vcmask 97280
        %v474 = vsel %vm473, %v472, %v342
        %vm475 = vcmask 105472
        %v476 = vsel %vm475, %v474, %v351
        %vm477 = vcmask 113664
        %v478 = vsel %vm477, %v476, %v360
        %vm479 = vcmask 121856
        %v480 = vsel %vm479, %v478, %v369
        %v481 = vsel %vm451, %v378, %v387
        %v482 = vsel %vm453, %v481, %v396
        %v483 = vsel %vm455, %v482, %v405
        %v484 = vsel %vm457, %v483, %v414
        %v485 = vsel %vm459, %v484, %v423
        %v486 = vsel %vm461, %v485, %v432
        %v487 = vsel %vm463, %v486, %v441
        %v488 = vsel %vm465, %v487, %v449
        %490 = vrot.lane.b32.xlu0 %v488, 16
        %v491 = vpop.permute.xlu0 %490
        %vm493 = vcmask 130048
        %v494 = vsel %vm493, %v480, %v491
        %v495 = vadd.f32 %v450, %v494
        %vm496 = vcmask 203776
        %497 = vst.msk [vmem:[#allocation2] sm:$0xff] %vm496, %v495
        %v498 = vld [vmem:[#allocation3] sm:$0xff]
        %v499 = vsel %vm451, %v231, %v240
        %v500 = vsel %vm453, %v499, %v249
        %v501 = vsel %vm455, %v500, %v258
        %v502 = vsel %vm457, %v501, %v267
        %v503 = vsel %vm459, %v502, %v276
        %v504 = vsel %vm461, %v503, %v285
        %v505 = vsel %vm463, %v504, %v294
        %v506 = vsel %vm465, %v505, %v303
        %v507 = vsel %vm467, %v506, %v312
        %v508 = vsel %vm469, %v507, %v321
        %v509 = vsel %vm471, %v508, %v330
        %v510 = vsel %vm473, %v509, %v339
        %v511 = vsel %vm475, %v510, %v348
        %v512 = vsel %vm477, %v511, %v357
        %v513 = vsel %vm479, %v512, %v366
        %v514 = vsel %vm451, %v375, %v384
        %v515 = vsel %vm453, %v514, %v393
        %v516 = vsel %vm455, %v515, %v402
        %v517 = vsel %vm457, %v516, %v411
        %v518 = vsel %vm459, %v517, %v420
        %v519 = vsel %vm461, %v518, %v429
        %v520 = vsel %vm463, %v519, %v438
        %v521 = vsel %vm465, %v520, %v446
        %523 = vrot.lane.b32.xlu0 %v521, 16
        %v524 = vpop.permute.xlu0 %523
        %v526 = vsel %vm493, %v513, %v524
        %v527 = vadd.f32 %v498, %v526
        %528 = vst.msk [vmem:[#allocation3] sm:$0xff] %vm496, %v527
        %p529 = scmp.eq.s32.totalorder %s24, 1
        // Predicated region
        $region41: #{tpu_custom_call.1} parent=27 // pred_check
          %p530 = pneg %p529
        $region42: #{tpu_custom_call.1} parent=27 // pred_check_branch
          %532 = sbr.rel (%p530) target = $region44
        $region43: #{tpu_custom_call.1} parent=27 // pred_region
          %v533 = vld [vmem:[#allocation2] sm:$0xff]
          %v534 = vld [vmem:[#allocation3] sm:$0xff]
          %v535 = vlaneseq
          %v536 = vshrl.u32 %v535, 7
          %v537 = vadd.s32 %v536, 8
          %v538 = vadd.s32 %v536, 16
          %v539 = vadd.s32 %v536, 24
          %v540 = vlaneseq
          %v541 = vand.u32 %v540, 127
          %vm542 = vcmp.le.s32.totalorder %v536, %v541
          %vm543 = vcmp.le.s32.totalorder %v537, %v541
          %vm544 = vcmp.le.s32.totalorder %v538, %v541
          %vm545 = vcmp.le.s32.totalorder %v539, %v541
          %v546 = vsel %vm542, 1, 0
          %v547 = vsel %vm543, 1, 0
          %v548 = vsel %vm544, 1, 0
          %v549 = vsel %vm545, 1, 0
          %v550 = vcvt.s32.f32 %v546
          %v551 = vcvt.s32.f32 %v547
          %v552 = vcvt.s32.f32 %v548
          %v553 = vcvt.s32.f32 %v549
          %v555 = vsel %vm496, %v533, 0
          %vm557 = vcmask 1040384
          %v559 = vsel %vm557, %v553, 0
          %561 = vmatprep.subr.mxu0 0.0
          %562 = vmatpush1.msra.mxu0 %v550
          %563 = vmatprep.subr.mxu0 0.0
          %564 = vmatpush1.msra.mxu0 %v551
          %565 = vmatprep.subr.mxu0 0.0
          %566 = vmatpush1.msra.mxu0 %v552
          %567 = vmatprep.subr.mxu0 0.0
          %568 = vmatpush1.msra.mxu0 %v559
          %569 = vmatprep.subr.mxu0 0.0
          %570 = vmatpush1.msra.mxu0 0.0
          %571 = vmatprep.subr.mxu0 0.0
          %572 = vmatpush1.msra.mxu0 0.0
          %573 = vmatprep.subr.mxu0 0.0
          %574 = vmatpush1.msra.mxu0 0.0
          %575 = vmatprep.subr.mxu0 0.0
          %576 = vmatpush1.msra.mxu0 0.0
          %577 = vmatprep.subr.mxu0 0.0
          %578 = vmatpush1.msra.mxu0 0.0
          %579 = vmatprep.subr.mxu0 0.0
          %580 = vmatpush1.msra.mxu0 0.0
          %581 = vmatprep.subr.mxu0 0.0
          %582 = vmatpush1.msra.mxu0 0.0
          %583 = vmatprep.subr.mxu0 0.0
          %584 = vmatpush1.msra.mxu0 0.0
          %585 = vmatprep.subr.mxu0 0.0
          %586 = vmatpush1.msra.mxu0 0.0
          %587 = vmatprep.subr.mxu0 0.0
          %588 = vmatpush1.msra.mxu0 0.0
          %589 = vmatprep.subr.mxu0 0.0
          %590 = vmatpush1.msra.mxu0 0.0
          %591 = vmatprep.subr.mxu0 0.0
          %592 = vmatpush1.msra.mxu0 0.0
          %593 = vmatprep.subr.mxu0 0.0
          %594 = vmatpush1.msra.mxu0 0.0
          %595 = vmatprep.subr.mxu0 0.0
          %596 = vmatpush1.msra.mxu0 0.0
          %597 = vmatprep.subr.mxu0 0.0
          %598 = vmatpush1.msra.mxu0 0.0
          %599 = vmatprep.subr.mxu0 0.0
          %600 = vmatpush1.msra.mxu0 0.0
          %601 = vmatprep.subr.mxu0 0.0
          %602 = vmatpush1.msra.mxu0 0.0
          %603 = vmatprep.subr.mxu0 0.0
          %604 = vmatpush1.msra.mxu0 0.0
          %605 = vmatprep.subr.mxu0 0.0
          %606 = vmatpush1.msra.mxu0 0.0
          %607 = vmatprep.subr.mxu0 0.0
          %608 = vmatpush1.msra.mxu0 0.0
          %609 = vmatprep.subr.mxu0 0.0
          %610 = vmatpush1.msra.mxu0 0.0
          %611 = vmatprep.subr.mxu0 0.0
          %612 = vmatpush1.msra.mxu0 0.0
          %613 = vmatprep.subr.mxu0 0.0
          %614 = vmatpush1.msra.mxu0 0.0
          %615 = vmatprep.subr.mxu0 0.0
          %616 = vmatpush1.msra.mxu0 0.0
          %617 = vmatprep.subr.mxu0 0.0
          %618 = vmatpush1.msra.mxu0 0.0
          %619 = vmatprep.subr.mxu0 0.0
          %620 = vmatpush1.msra.mxu0 0.0
          %621 = vmatprep.subr.mxu0 0.0
          %622 = vmatpush1.msra.mxu0 0.0
          %623 = vmatprep.subr.mxu0 0.0
          %624 = vmatpush1.msra.mxu0 0.0
          %625 = vmatprep.mubr.f32.mxu0 0.0
          %626 = vmatmul.mubr.f32.gmra.mrb[0].mxu0 %v555
          %v627 = vpop.f32.mrb[0].mxu0
          %v628 = vadd.f32 0.0, %v627
          %v629 = vpop.f32.mrb[0].mxu0
          %630 = vdwg.mxu0
          %v632 = vsel %vm496, %v534, 0
          %634 = vmatprep.subr.mxu0 0.0
          %635 = vmatpush1.msra.mxu0 %v550
          %636 = vmatprep.subr.mxu0 0.0
          %637 = vmatpush1.msra.mxu0 %v551
          %638 = vmatprep.subr.mxu0 0.0
          %639 = vmatpush1.msra.mxu0 %v552
          %640 = vmatprep.subr.mxu0 0.0
          %641 = vmatpush1.msra.mxu0 %v559
          %642 = vmatprep.subr.mxu0 0.0
          %643 = vmatpush1.msra.mxu0 0.0
          %644 = vmatprep.subr.mxu0 0.0
          %645 = vmatpush1.msra.mxu0 0.0
          %646 = vmatprep.subr.mxu0 0.0
          %647 = vmatpush1.msra.mxu0 0.0
          %648 = vmatprep.subr.mxu0 0.0
          %649 = vmatpush1.msra.mxu0 0.0
          %650 = vmatprep.subr.mxu0 0.0
          %651 = vmatpush1.msra.mxu0 0.0
          %652 = vmatprep.subr.mxu0 0.0
          %653 = vmatpush1.msra.mxu0 0.0
          %654 = vmatprep.subr.mxu0 0.0
          %655 = vmatpush1.msra.mxu0 0.0
          %656 = vmatprep.subr.mxu0 0.0
          %657 = vmatpush1.msra.mxu0 0.0
          %658 = vmatprep.subr.mxu0 0.0
          %659 = vmatpush1.msra.mxu0 0.0
          %660 = vmatprep.subr.mxu0 0.0
          %661 = vmatpush1.msra.mxu0 0.0
          %662 = vmatprep.subr.mxu0 0.0
          %663 = vmatpush1.msra.mxu0 0.0
          %664 = vmatprep.subr.mxu0 0.0
          %665 = vmatpush1.msra.mxu0 0.0
          %666 = vmatprep.subr.mxu0 0.0
          %667 = vmatpush1.msra.mxu0 0.0
          %668 = vmatprep.subr.mxu0 0.0
          %669 = vmatpush1.msra.mxu0 0.0
          %670 = vmatprep.subr.mxu0 0.0
          %671 = vmatpush1.msra.mxu0 0.0
          %672 = vmatprep.subr.mxu0 0.0
          %673 = vmatpush1.msra.mxu0 0.0
          %674 = vmatprep.subr.mxu0 0.0
          %675 = vmatpush1.msra.mxu0 0.0
          %676 = vmatprep.subr.mxu0 0.0
          %677 = vmatpush1.msra.mxu0 0.0
          %678 = vmatprep.subr.mxu0 0.0
          %679 = vmatpush1.msra.mxu0 0.0
          %680 = vmatprep.subr.mxu0 0.0
          %681 = vmatpush1.msra.mxu0 0.0
          %682 = vmatprep.subr.mxu0 0.0
          %683 = vmatpush1.msra.mxu0 0.0
          %684 = vmatprep.subr.mxu0 0.0
          %685 = vmatpush1.msra.mxu0 0.0
          %686 = vmatprep.subr.mxu0 0.0
          %687 = vmatpush1.msra.mxu0 0.0
          %688 = vmatprep.subr.mxu0 0.0
          %689 = vmatpush1.msra.mxu0 0.0
          %690 = vmatprep.subr.mxu0 0.0
          %691 = vmatpush1.msra.mxu0 0.0
          %692 = vmatprep.subr.mxu0 0.0
          %693 = vmatpush1.msra.mxu0 0.0
          %694 = vmatprep.subr.mxu0 0.0
          %695 = vmatpush1.msra.mxu0 0.0
          %696 = vmatprep.subr.mxu0 0.0
          %697 = vmatpush1.msra.mxu0 0.0
          %698 = vmatprep.mubr.f32.mxu0 0.0
          %699 = vmatmul.mubr.f32.gmra.mrb[0].mxu0 %v632
          %v700 = vpop.f32.mrb[0].mxu0
          %v701 = vadd.f32 1e-16, %v700
          %v702 = vpop.f32.mrb[0].mxu0
          %703 = vdwg.mxu0
          %v704 = vrcp.pop %v701
          %v705 = vmul.f32 %v701, %v704
          %v706 = vsub.f32 2.0, %v705
          %v707 = vmul.f32 %v704, %v706
          %v708 = vmul.f32 %v628, %v707
          %v709 = vmul.f32 %v708, %v533
          %v710 = vrcp.pop %v628
          %v711 = vmul.f32 %v628, %v710
          %v712 = vsub.f32 2.0, %v711
          %v713 = vmul.f32 %v710, %v712
          %715 = vset.pattern.permute.xlu0 24
          %716 = vperm.xlu0 %715, %v713
          %v717 = vpop.permute.xlu0 %716
          %v719 = vmul.f32 %v709, %v717
          %v720 = vsel %vm496, %v719, 0.0
          %721 = vadd.xlane.f32.xlu0 %v720
          %v722 = vpop.xlane.xlu0 %721
          %723 = vst.msk [vmem:[%s215] sm:$0xff] %vm451, %v722
        $region44: #{tpu_custom_call.1} parent=27 // pred_fallthru
          _
        %p724 = scmp.lt.s32.totalorder %s23, 1
        %s725 = scalar_select %p724, %s23, 1
        %s726 = smul.addr %s725, 8
        %s727 = scalar_lea.vmem %s2, %s726
        // Predicated region
        $region45: #{tpu_custom_call.1} parent=27 // pred_check
          %p728 = pneg %p105
        $region46: #{tpu_custom_call.1} parent=27 // pred_check_branch
          %730 = sbr.rel (%p728) target = $region48
        $region47: #{tpu_custom_call.1} parent=27 // pred_region
          _
        $region48: #{tpu_custom_call.1} parent=27 // pred_fallthru
          _
      $region28: #{tpu_custom_call.1} parent=5 // pred_fallthru
        _
      %p731 = scmp.le.s32.totalorder 2, %s14
      // Predicated region
      $region49: #{tpu_custom_call.1} parent=5 // pred_check
        %p732 = pneg %p731
      $region50: #{tpu_custom_call.1} parent=5 // pred_check_branch
        %734 = sbr.rel (%p732) target = $region52
      $region51: #{tpu_custom_call.1} parent=5 // pred_region
        %s735 = ssub.s32 %s14, 2
        // Predicated region
        $region53: #{tpu_custom_call.1} parent=51 // pred_check
          %p736 = pneg %p111
        $region54: #{tpu_custom_call.1} parent=51 // pred_check_branch
          %738 = sbr.rel (%p736) target = $region56
        $region55: #{tpu_custom_call.1} parent=51 // pred_region
          %p739 = scmp.lt.s32.totalorder %s25, 1
          %s740 = scalar_select %p739, %s25, 1
          %s741 = smul.addr %s740, 8
          %s742 = scalar_lea.vmem %s2, %s741
        $region56: #{tpu_custom_call.1} parent=51 // pred_fallthru
          _
      $region52: #{tpu_custom_call.1} parent=5 // pred_fallthru
        _
    $region6: #{tpu_custom_call.1} parent=1 // loop_footer
      %s18 = sadd.s32 1, %s14
    $region7: #{tpu_custom_call.1} parent=1 // loop_footer_branch
      %13 = sbr.rel target = $region3
    $region8: #{tpu_custom_call.1} parent=1 // loop_exit
      _
    %743 = vsyncpa [#allocation5], 1
    %s744 = scalar_lea.sflag [#allocation5], 1
    %745 = vsyncpa %s744, 1
    %746 = vsyncpa [#allocation7], 1
    %s747 = scalar_lea.sflag [#allocation7], 1
    %748 = vsyncpa %s747, 1

</llo_original>
